<compile_context>
chip_gen: v7x
topology: tpu7x:2x2x1
jax: 0.10.0
libtpu: 0.0.40
codegen_flags: <defaults>
</compile_context>

<pallas_src>
import jax
import jax.numpy as jnp
import numpy as np
from jax.experimental import pallas as pl
from jax.experimental.pallas import tpu as pltpu

LANE = 128

# Inert padding values for tile-padding columns (padded Gaussians are invisible
# even if a consumer uses the padded layout directly).
PAD_SCALING_LOG = -30.0     # exp(-30) ~= 9.4e-14
PAD_OPACITY_LOGIT = -30.0   # sigmoid(-30) ~= 9.4e-14

# Fused-slab channel layout.
# full mode (emit_scales_rotations=True):  [cov6 | scales3 | rot4 | opacity1] = 14
# cov-only mode:                           [cov6 | opacity1]                 = 7
CHANNELS_FULL = {"cov3D": (0, 6), "scales": (6, 9), "rotations": (9, 13), "opacities": (13, 14)}
CHANNELS_COV_ONLY = {"cov3D": (0, 6), "opacities": (6, 7)}


def _round_up(a: int, b: int) -> int:
    return -(-a // b) * b


def _default_block_points() -> int:
    """TB=1024 (128K pts/step) is safe on v7x (64 MiB VMEM); on 128-MiB-VMEM
    chips (v5e/v6e) use a 2x larger tile to shave the remaining per-step overhead."""
    try:
        info = pltpu.get_tpu_info()
        if getattr(info, "vmem_capacity_bytes", 0) >= 96 * 1024 * 1024:
            return 256 * 1024
    except Exception:
        pass
    return 128 * 1024


def _tiling(num_points: int, block_points: int):
    """Returns (tb, m_pad, n_pad): sublane-block size, padded sublane rows, padded points."""
    m = -(-num_points // LANE)                       # sublane rows needed
    tb = max(8, min(block_points // LANE, _round_up(m, 8)))
    tb = (tb // 8) * 8                               # sublane block: multiple of 8
    m_pad = _round_up(m, tb)
    return tb, m_pad, m_pad * LANE


# ----------------------------------------------------------------------------
# Pallas kernel
# ----------------------------------------------------------------------------
def _make_gaussian_activation_kernel(scale_modifier: float,
                                     emit_scales_rotations: bool,
                                     approx_transcendentals: bool):
    sm = float(scale_modifier)
    apply_sm = sm != 1.0

    def kernel(p_ref, o_ref):
        # p_ref block: (8, TB, 128); each channel slab is a dense (TB, 128) tile.
        #   rows 0-2 : _scaling (log space)
        #   rows 3-6 : _rotation (un-normalized quaternion, w-first)
        #   row  7   : _opacity (logit space)
        # o_ref block: (C_out, TB, 128) fused output slab (see CHANNELS_* layout).

        # --- get_scaling = exp(_scaling) ----------------------------------
        s0 = jnp.exp(p_ref[0])
        s1 = jnp.exp(p_ref[1])
        s2 = jnp.exp(p_ref[2])

        # --- quaternion handling ------------------------------------------
        qr = p_ref[3]
        qx = p_ref[4]
        qy = p_ref[5]
        qz = p_ref[6]
        qsq = qr * qr + qx * qx + qy * qy + qz * qz
        inv_n = jax.lax.rsqrt(qsq)            # EUP; unclamped (matches build_rotation)

        # build_rotation: normalized quaternion (no eps clamp)
        r = qr * inv_n
        x = qx * inv_n
        y = qy * inv_n
        z = qz * inv_n

        R00 = 1.0 - 2.0 * (y * y + z * z)
        R01 = 2.0 * (x * y - r * z)
        R02 = 2.0 * (x * z + r * y)
        R10 = 2.0 * (x * y + r * z)
        R11 = 1.0 - 2.0 * (x * x + z * z)
        R12 = 2.0 * (y * z - r * x)
        R20 = 2.0 * (x * z - r * y)
        R21 = 2.0 * (y * z + r * x)
        R22 = 1.0 - 2.0 * (x * x + y * y)

        # --- covariance_activation: L = R @ diag(sm * s); Sigma = L @ L^T ---
        if apply_sm:
            ss0, ss1, ss2 = sm * s0, sm * s1, sm * s2
        else:
            ss0, ss1, ss2 = s0, s1, s2

        L00, L01, L02 = R00 * ss0, R01 * ss1, R02 * ss2
        L10, L11, L12 = R10 * ss0, R11 * ss1, R12 * ss2
        L20, L21, L22 = R20 * ss0, R21 * ss1, R22 * ss2

        # strip_symmetric -> [xx, xy, xz, yy, yz, zz]
        o_ref[0] = L00 * L00 + L01 * L01 + L02 * L02
        o_ref[1] = L00 * L10 + L01 * L11 + L02 * L12
        o_ref[2] = L00 * L20 + L01 * L21 + L02 * L22
        o_ref[3] = L10 * L10 + L11 * L11 + L12 * L12
        o_ref[4] = L10 * L20 + L11 * L21 + L12 * L22
        o_ref[5] = L20 * L20 + L21 * L21 + L22 * L22

        if emit_scales_rotations:
            # --- get_scaling outputs --------------------------------------
            o_ref[6] = s0
            o_ref[7] = s1
            o_ref[8] = s2
            # --- get_rotation = F.normalize: q * min(1/||q||, 1e12) -------
            inv_nc = jnp.minimum(inv_n, 1e12)
            o_ref[9] = qr * inv_nc
            o_ref[10] = qx * inv_nc
            o_ref[11] = qy * inv_nc
            o_ref[12] = qz * inv_nc
            opa_row = 13
        else:
            opa_row = 6

        # --- get_opacity = sigmoid(_opacity) ------------------------------
        # reciprocal on the EUP slot (approx=True only when the consumer tolerates it)
        o_ref[opa_row] = pl.reciprocal(1.0 + jnp.exp(-p_ref[7]),
                                       approx=approx_transcendentals)

    return kernel


# ----------------------------------------------------------------------------
# Packing (done ONCE at model construction) and kernel wrapper
# ----------------------------------------------------------------------------
def pack_gaussian_params(scaling, rotation, opacity, block_points: int):
    """Packs (N,3)/(N,4)/(N,1) PyTorch-convention params into one persistent
    feature-major, tile-padded (8, N_pad) f32 array. Padded columns are INERT
    (opacity ~ 0, scales ~ 0, identity quaternion)."""
    n = scaling.shape[0]
    _, _, n_pad = _tiling(n, block_points)
    s = jnp.asarray(scaling, jnp.float32).T      # (3, N)
    q = jnp.asarray(rotation, jnp.float32).T     # (4, N)
    o = jnp.asarray(opacity, jnp.float32).T      # (1, N)
    packed = jnp.concatenate([s, q, o], axis=0)  # (8, N)
    pad = n_pad - n
    if pad:
        pad_cols = (jnp.zeros((8, pad), jnp.float32)
                    .at[0:3, :].set(PAD_SCALING_LOG)   # exp -> ~0
                    .at[3, :].set(1.0)                 # identity quat (finite math)
                    .at[7, :].set(PAD_OPACITY_LOGIT))  # sigmoid -> ~0
        packed = jnp.concatenate([packed, pad_cols], axis=1)
    return packed, n


def gaussian_activations_pallas(packed_params, num_points,
                                scale_modifier: float = 1.0,
                                block_points: int = None,
                                emit_scales_rotations: bool = True,
                                approx_transcendentals: bool = False):
    """Runs the per-Gaussian activation + covariance kernel.

    `packed_params`: (8, N_pad) from pack_gaussian_params (same block_points).
    Returns ONE fused, feature-major, tile-padded slab (C_out, N_pad) with
    channel layout CHANNELS_FULL / CHANNELS_COV_ONLY. No un-padding slices are
    performed here (padded Gaussians are inert).
    """
    if block_points is None:
        block_points = _default_block_points()
    tb, m_pad, n_pad = _tiling(num_points, block_points)
    assert packed_params.shape == (8, n_pad), (packed_params.shape, (8, n_pad))

    c_out = 14 if emit_scales_rotations else 7

    # Free reshape: point axis -> (sublane rows, lanes).
    p3 = packed_params.reshape(8, m_pad, LANE)

    grid = (m_pad // tb,)
    out_shape = jax.ShapeDtypeStruct((c_out, m_pad, LANE), jnp.float32)
    in_specs = [pl.BlockSpec((8, tb, LANE), lambda i: (0, i, 0))]
    out_specs = pl.BlockSpec((c_out, tb, LANE), lambda i: (0, i, 0))

    # Actual double-buffered footprint + headroom (fits the v7x 64-MiB budget).
    block_bytes = (8 + c_out) * tb * LANE * 4
    vmem_limit = int(min(max(2 * block_bytes + (4 << 20), 16 << 20), 64 << 20))

    out = pl.pallas_call(
        _make_gaussian_activation_kernel(float(scale_modifier),
                                         emit_scales_rotations,
                                         approx_transcendentals),
        out_shape=out_shape,
        grid=grid,
        in_specs=in_specs,
        out_specs=out_specs,
        compiler_params=pltpu.CompilerParams(
            dimension_semantics=("parallel",),   # point tiles shard across TCs (v7x megacore)
            vmem_limit_bytes=vmem_limit,
        ),
    )(p3)

    return out.reshape(c_out, n_pad)             # free reshape (contiguous collapse)


def unpack_activations(packed_out, channels, num_points):
    """Convenience (test / debugging) helper: slices the fused padded slab into
    per-quantity (N, C) arrays. NOTE: this materializes copies; the hot path
    should consume the padded slab + channel map directly."""
    out = {}
    for name, (lo, hi) in channels.items():
        out[name] = packed_out[lo:hi, :num_points].T
    return out


# ----------------------------------------------------------------------------
# JAX-side GaussianModel (parameter container + glue)
# ----------------------------------------------------------------------------
class GaussianModelJAX:
    def __init__(self, sh_degree, xyz, features_dc, features_rest,
                 scaling, rotation, opacity,
                 block_points: int = None,
                 emit_scales_rotations: bool = True,
                 approx_transcendentals: bool = False):
        self.active_sh_degree = sh_degree
        self.max_sh_degree = sh_degree
        self.scale_modifier = 1.0
        self.block_points = block_points if block_points is not None else _default_block_points()
        self.emit_scales_rotations = emit_scales_rotations
        self.approx_transcendentals = approx_transcendentals

        self._xyz = jnp.asarray(xyz, jnp.float32)
        self._features_dc = jnp.asarray(features_dc, jnp.float32)
        self._features_rest = jnp.asarray(features_rest, jnp.float32)

        # Persistent feature-major, tile-padded activation parameters
        # (no per-forward transpose / pack passes over HBM).
        self._act_params, self._num_points = pack_gaussian_params(
            scaling, rotation, opacity, self.block_points)

        # Fixed per-forward tensors cached at construction (no per-call HBM passes):
        #   get_features = cat((features_dc, features_rest), dim=1)
        #   screenspace_points = zeros_like(xyz) + 0
        self._shs = jnp.concatenate((self._features_dc, self._features_rest), axis=1)
        self._means2D = jnp.zeros_like(self._xyz)

    def forward(self):
        packed_out = gaussian_activations_pallas(
            self._act_params, self._num_points, self.scale_modifier,
            self.block_points, self.emit_scales_rotations,
            self.approx_transcendentals)

        channels = CHANNELS_FULL if self.emit_scales_rotations else CHANNELS_COV_ONLY

        # TODO(synk): GaussianRasterizer (CUDA tile rasterization of the splats into an
        # image) and viewpoint_camera.postprocess have no clean Pallas equivalent;
        # rendered_image / radii / depth are not produced here.
        #
        # Activation outputs are returned as ONE fused, padded, feature-major slab
        # (C_out, N_pad) plus the channel map and valid count; no un-padding slices
        # are materialized on the hot path (padded Gaussians are inert: opacity ~ 0,
        # scales ~ 0).
        return {
            "means3D": self._xyz,
            "viewspace_points": self._means2D,
            "shs": self._shs,
            "activations_packed": packed_out,    # (C_out, N_pad)
            "channels": channels,                # name -> (row_lo, row_hi)
            "num_points": self._num_points,
        }


# ----------------------------------------------------------------------------
# Pure-JAX reference (mirrors the PyTorch math) for verification
# ----------------------------------------------------------------------------
def _reference(scaling, rotation, opacity, scale_modifier=1.0):
    s_act = jnp.exp(scaling)                                   # (N,3)
    opa = jax.nn.sigmoid(opacity)                              # (N,1)
    qnorm = jnp.linalg.norm(rotation, axis=1, keepdims=True)
    rotn = rotation / jnp.maximum(qnorm, 1e-12)

    q = rotation / qnorm
    r, x, y, z = q[:, 0], q[:, 1], q[:, 2], q[:, 3]
    R = jnp.stack([
        jnp.stack([1 - 2 * (y * y + z * z), 2 * (x * y - r * z), 2 * (x * z + r * y)], -1),
        jnp.stack([2 * (x * y + r * z), 1 - 2 * (x * x + z * z), 2 * (y * z - r * x)], -1),
        jnp.stack([2 * (x * z - r * y), 2 * (y * z + r * x), 1 - 2 * (x * x + y * y)], -1),
    ], axis=1)                                                 # (N,3,3)
    L = R * (scale_modifier * s_act)[:, None, :]               # R @ diag(s)
    Sigma = jnp.einsum("nij,nkj->nik", L, L)
    cov6 = jnp.stack([Sigma[:, 0, 0], Sigma[:, 0, 1], Sigma[:, 0, 2],
                      Sigma[:, 1, 1], Sigma[:, 1, 2], Sigma[:, 2, 2]], axis=1)
    return cov6, s_act, rotn, opa


if __name__ == "__main__":
    key = jax.random.PRNGKey(0)
    N = 1000         # deliberately NOT a multiple of 128/tile to exercise padding
    sh_degree = 1    # features_rest has (sh_degree+1)^2 - 1 = 3 coefficients

    k = jax.random.split(key, 6)
    xyz = jax.random.normal(k[0], (N, 3), jnp.float32)
    f_dc = jax.random.normal(k[1], (N, 1, 3), jnp.float32)
    f_rest = jax.random.normal(k[2], (N, 3, 3), jnp.float32)
    scaling = 0.5 * jax.random.normal(k[3], (N, 3), jnp.float32)
    rotation = jax.random.normal(k[4], (N, 4), jnp.float32) + jnp.array(
        [1.0, 0.0, 0.0, 0.0], jnp.float32)
    opacity = jax.random.normal(k[5], (N, 1), jnp.float32)

    # --- full mode: cov + scales + rotations + opacity ----------------------
    model = GaussianModelJAX(sh_degree, xyz, f_dc, f_rest, scaling, rotation, opacity)
    out = model.forward()
    jax.block_until_ready(out)

    cov_ref, s_ref, r_ref, o_ref = _reference(scaling, rotation, opacity,
                                              model.scale_modifier)

    acts = unpack_activations(out["activations_packed"], out["channels"],
                              out["num_points"])
    np.testing.assert_allclose(np.asarray(acts["cov3D"]), np.asarray(cov_ref),
                               rtol=1e-5, atol=1e-5)
    np.testing.assert_allclose(np.asarray(acts["scales"]), np.asarray(s_ref),
                               rtol=1e-5, atol=1e-6)
    np.testing.assert_allclose(np.asarray(acts["rotations"]), np.asarray(r_ref),
                               rtol=1e-5, atol=1e-6)
    np.testing.assert_allclose(np.asarray(acts["opacities"]), np.asarray(o_ref),
                               rtol=1e-5, atol=1e-6)

    # padded Gaussians must be inert (visible if the consumer keeps the padded layout)
    packed_np = np.asarray(out["activations_packed"])
    lo, hi = out["channels"]["opacities"]
    assert packed_np[lo:hi, N:].max(initial=0.0) < 1e-6, "padded opacity not inert"
    lo, hi = out["channels"]["scales"]
    assert np.abs(packed_np[lo:hi, N:]).max(initial=0.0) < 1e-6, "padded scales not inert"

    # --- cov-only mode (rasterizer consumes cov3D_precomp): 7 output channels ----
    model2 = GaussianModelJAX(sh_degree, xyz, f_dc, f_rest, scaling, rotation, opacity,
                              emit_scales_rotations=False)
    out2 = model2.forward()
    jax.block_until_ready(out2)
    acts2 = unpack_activations(out2["activations_packed"], out2["channels"],
                               out2["num_points"])
    np.testing.assert_allclose(np.asarray(acts2["cov3D"]), np.asarray(cov_ref),
                               rtol=1e-5, atol=1e-5)
    np.testing.assert_allclose(np.asarray(acts2["opacities"]), np.asarray(o_ref),
                               rtol=1e-5, atol=1e-6)

    print("KERNEL_OK")
</pallas_src>

<mosaic_0001>
module attributes {stable_mosaic.version = 11 : i64} {
  func.func @kernel(%arg0: i32, %arg1: memref<8x8x128xf32, #tpu.memory_space<vmem>>, %arg2: memref<14x8x128xf32, #tpu.memory_space<vmem>>) attributes {dimension_semantics = [#tpu.dimension_semantics<parallel>], iteration_bounds = array<i64: 1>, scalar_prefetch = 0 : i64, scratch_operands = 0 : i64, tpu.core_type = #tpu.core_type<tc>, window_params = [{transform_indices = @transform_0, window_bounds = array<i64: 8, 8, 128>}, {transform_indices = @transform_1, window_bounds = array<i64: 14, 8, 128>}]} {
    %c0 = arith.constant 0 : index
    %c0_0 = arith.constant 0 : index
    %c0_1 = arith.constant 0 : index
    %0 = vector.load %arg1[%c0, %c0_0, %c0_1] : memref<8x8x128xf32, #tpu.memory_space<vmem>>, vector<1x8x128xf32>
    %1 = vector.shape_cast %0 : vector<1x8x128xf32> to vector<8x128xf32>
    %2 = math.exp %1 : vector<8x128xf32>
    %c1 = arith.constant 1 : index
    %c0_2 = arith.constant 0 : index
    %c0_3 = arith.constant 0 : index
    %3 = vector.load %arg1[%c1, %c0_2, %c0_3] : memref<8x8x128xf32, #tpu.memory_space<vmem>>, vector<1x8x128xf32>
    %4 = vector.shape_cast %3 : vector<1x8x128xf32> to vector<8x128xf32>
    %5 = math.exp %4 : vector<8x128xf32>
    %c2 = arith.constant 2 : index
    %c0_4 = arith.constant 0 : index
    %c0_5 = arith.constant 0 : index
    %6 = vector.load %arg1[%c2, %c0_4, %c0_5] : memref<8x8x128xf32, #tpu.memory_space<vmem>>, vector<1x8x128xf32>
    %7 = vector.shape_cast %6 : vector<1x8x128xf32> to vector<8x128xf32>
    %8 = math.exp %7 : vector<8x128xf32>
    %c3 = arith.constant 3 : index
    %c0_6 = arith.constant 0 : index
    %c0_7 = arith.constant 0 : index
    %9 = vector.load %arg1[%c3, %c0_6, %c0_7] : memref<8x8x128xf32, #tpu.memory_space<vmem>>, vector<1x8x128xf32>
    %10 = vector.shape_cast %9 : vector<1x8x128xf32> to vector<8x128xf32>
    %c4 = arith.constant 4 : index
    %c0_8 = arith.constant 0 : index
    %c0_9 = arith.constant 0 : index
    %11 = vector.load %arg1[%c4, %c0_8, %c0_9] : memref<8x8x128xf32, #tpu.memory_space<vmem>>, vector<1x8x128xf32>
    %12 = vector.shape_cast %11 : vector<1x8x128xf32> to vector<8x128xf32>
    %c5 = arith.constant 5 : index
    %c0_10 = arith.constant 0 : index
    %c0_11 = arith.constant 0 : index
    %13 = vector.load %arg1[%c5, %c0_10, %c0_11] : memref<8x8x128xf32, #tpu.memory_space<vmem>>, vector<1x8x128xf32>
    %14 = vector.shape_cast %13 : vector<1x8x128xf32> to vector<8x128xf32>
    %c6 = arith.constant 6 : index
    %c0_12 = arith.constant 0 : index
    %c0_13 = arith.constant 0 : index
    %15 = vector.load %arg1[%c6, %c0_12, %c0_13] : memref<8x8x128xf32, #tpu.memory_space<vmem>>, vector<1x8x128xf32>
    %16 = vector.shape_cast %15 : vector<1x8x128xf32> to vector<8x128xf32>
    %17 = arith.mulf %10, %10 : vector<8x128xf32>
    %18 = arith.mulf %12, %12 : vector<8x128xf32>
    %19 = arith.addf %17, %18 : vector<8x128xf32>
    %20 = arith.mulf %14, %14 : vector<8x128xf32>
    %21 = arith.addf %19, %20 : vector<8x128xf32>
    %22 = arith.mulf %16, %16 : vector<8x128xf32>
    %23 = arith.addf %21, %22 : vector<8x128xf32>
    %24 = math.rsqrt %23 : vector<8x128xf32>
    %25 = arith.mulf %10, %24 : vector<8x128xf32>
    %26 = arith.mulf %12, %24 : vector<8x128xf32>
    %27 = arith.mulf %14, %24 : vector<8x128xf32>
    %28 = arith.mulf %16, %24 : vector<8x128xf32>
    %29 = arith.mulf %27, %27 : vector<8x128xf32>
    %30 = arith.mulf %28, %28 : vector<8x128xf32>
    %31 = arith.addf %29, %30 : vector<8x128xf32>
    %cst = arith.constant 2.000000e+00 : f32
    %32 = vector.broadcast %cst : f32 to vector<8x128xf32>
    %33 = arith.mulf %32, %31 : vector<8x128xf32>
    %cst_14 = arith.constant 1.000000e+00 : f32
    %34 = vector.broadcast %cst_14 : f32 to vector<8x128xf32>
    %35 = arith.subf %34, %33 : vector<8x128xf32>
    %36 = arith.mulf %26, %27 : vector<8x128xf32>
    %37 = arith.mulf %25, %28 : vector<8x128xf32>
    %38 = arith.subf %36, %37 : vector<8x128xf32>
    %cst_15 = arith.constant 2.000000e+00 : f32
    %39 = vector.broadcast %cst_15 : f32 to vector<8x128xf32>
    %40 = arith.mulf %39, %38 : vector<8x128xf32>
    %41 = arith.mulf %26, %28 : vector<8x128xf32>
    %42 = arith.mulf %25, %27 : vector<8x128xf32>
    %43 = arith.addf %41, %42 : vector<8x128xf32>
    %cst_16 = arith.constant 2.000000e+00 : f32
    %44 = vector.broadcast %cst_16 : f32 to vector<8x128xf32>
    %45 = arith.mulf %44, %43 : vector<8x128xf32>
    %46 = arith.mulf %26, %27 : vector<8x128xf32>
    %47 = arith.mulf %25, %28 : vector<8x128xf32>
    %48 = arith.addf %46, %47 : vector<8x128xf32>
    %cst_17 = arith.constant 2.000000e+00 : f32
    %49 = vector.broadcast %cst_17 : f32 to vector<8x128xf32>
    %50 = arith.mulf %49, %48 : vector<8x128xf32>
    %51 = arith.mulf %26, %26 : vector<8x128xf32>
    %52 = arith.mulf %28, %28 : vector<8x128xf32>
    %53 = arith.addf %51, %52 : vector<8x128xf32>
    %cst_18 = arith.constant 2.000000e+00 : f32
    %54 = vector.broadcast %cst_18 : f32 to vector<8x128xf32>
    %55 = arith.mulf %54, %53 : vector<8x128xf32>
    %cst_19 = arith.constant 1.000000e+00 : f32
    %56 = vector.broadcast %cst_19 : f32 to vector<8x128xf32>
    %57 = arith.subf %56, %55 : vector<8x128xf32>
    %58 = arith.mulf %27, %28 : vector<8x128xf32>
    %59 = arith.mulf %25, %26 : vector<8x128xf32>
    %60 = arith.subf %58, %59 : vector<8x128xf32>
    %cst_20 = arith.constant 2.000000e+00 : f32
    %61 = vector.broadcast %cst_20 : f32 to vector<8x128xf32>
    %62 = arith.mulf %61, %60 : vector<8x128xf32>
    %63 = arith.mulf %26, %28 : vector<8x128xf32>
    %64 = arith.mulf %25, %27 : vector<8x128xf32>
    %65 = arith.subf %63, %64 : vector<8x128xf32>
    %cst_21 = arith.constant 2.000000e+00 : f32
    %66 = vector.broadcast %cst_21 : f32 to vector<8x128xf32>
    %67 = arith.mulf %66, %65 : vector<8x128xf32>
    %68 = arith.mulf %27, %28 : vector<8x128xf32>
    %69 = arith.mulf %25, %26 : vector<8x128xf32>
    %70 = arith.addf %68, %69 : vector<8x128xf32>
    %cst_22 = arith.constant 2.000000e+00 : f32
    %71 = vector.broadcast %cst_22 : f32 to vector<8x128xf32>
    %72 = arith.mulf %71, %70 : vector<8x128xf32>
    %73 = arith.mulf %26, %26 : vector<8x128xf32>
    %74 = arith.mulf %27, %27 : vector<8x128xf32>
    %75 = arith.addf %73, %74 : vector<8x128xf32>
    %cst_23 = arith.constant 2.000000e+00 : f32
    %76 = vector.broadcast %cst_23 : f32 to vector<8x128xf32>
    %77 = arith.mulf %76, %75 : vector<8x128xf32>
    %cst_24 = arith.constant 1.000000e+00 : f32
    %78 = vector.broadcast %cst_24 : f32 to vector<8x128xf32>
    %79 = arith.subf %78, %77 : vector<8x128xf32>
    %80 = arith.mulf %35, %2 : vector<8x128xf32>
    %81 = arith.mulf %40, %5 : vector<8x128xf32>
    %82 = arith.mulf %45, %8 : vector<8x128xf32>
    %83 = arith.mulf %50, %2 : vector<8x128xf32>
    %84 = arith.mulf %57, %5 : vector<8x128xf32>
    %85 = arith.mulf %62, %8 : vector<8x128xf32>
    %86 = arith.mulf %67, %2 : vector<8x128xf32>
    %87 = arith.mulf %72, %5 : vector<8x128xf32>
    %88 = arith.mulf %79, %8 : vector<8x128xf32>
    %89 = arith.mulf %80, %80 : vector<8x128xf32>
    %90 = arith.mulf %81, %81 : vector<8x128xf32>
    %91 = arith.addf %89, %90 : vector<8x128xf32>
    %92 = arith.mulf %82, %82 : vector<8x128xf32>
    %93 = arith.addf %91, %92 : vector<8x128xf32>
    %c0_25 = arith.constant 0 : index
    %c0_26 = arith.constant 0 : index
    %c0_27 = arith.constant 0 : index
    %94 = vector.load %arg2[%c0_25, %c0_26, %c0_27] : memref<14x8x128xf32, #tpu.memory_space<vmem>>, vector<1x8x128xf32>
    %95 = vector.shape_cast %94 : vector<1x8x128xf32> to vector<8x128xf32>
    %96 = vector.shape_cast %93 : vector<8x128xf32> to vector<1x8x128xf32>
    tpu.vector_store %arg2[%c0_25, %c0_26, %c0_27], %96 {strides = array<i32>} : memref<14x8x128xf32, #tpu.memory_space<vmem>>, vector<1x8x128xf32>,
    %97 = arith.mulf %80, %83 : vector<8x128xf32>
    %98 = arith.mulf %81, %84 : vector<8x128xf32>
    %99 = arith.addf %97, %98 : vector<8x128xf32>
    %100 = arith.mulf %82, %85 : vector<8x128xf32>
    %101 = arith.addf %99, %100 : vector<8x128xf32>
    %c1_28 = arith.constant 1 : index
    %c0_29 = arith.constant 0 : index
    %c0_30 = arith.constant 0 : index
    %102 = vector.load %arg2[%c1_28, %c0_29, %c0_30] : memref<14x8x128xf32, #tpu.memory_space<vmem>>, vector<1x8x128xf32>
    %103 = vector.shape_cast %102 : vector<1x8x128xf32> to vector<8x128xf32>
    %104 = vector.shape_cast %101 : vector<8x128xf32> to vector<1x8x128xf32>
    tpu.vector_store %arg2[%c1_28, %c0_29, %c0_30], %104 {strides = array<i32>} : memref<14x8x128xf32, #tpu.memory_space<vmem>>, vector<1x8x128xf32>,
    %105 = arith.mulf %80, %86 : vector<8x128xf32>
    %106 = arith.mulf %81, %87 : vector<8x128xf32>
    %107 = arith.addf %105, %106 : vector<8x128xf32>
    %108 = arith.mulf %82, %88 : vector<8x128xf32>
    %109 = arith.addf %107, %108 : vector<8x128xf32>
    %c2_31 = arith.constant 2 : index
    %c0_32 = arith.constant 0 : index
    %c0_33 = arith.constant 0 : index
    %110 = vector.load %arg2[%c2_31, %c0_32, %c0_33] : memref<14x8x128xf32, #tpu.memory_space<vmem>>, vector<1x8x128xf32>
    %111 = vector.shape_cast %110 : vector<1x8x128xf32> to vector<8x128xf32>
    %112 = vector.shape_cast %109 : vector<8x128xf32> to vector<1x8x128xf32>
    tpu.vector_store %arg2[%c2_31, %c0_32, %c0_33], %112 {strides = array<i32>} : memref<14x8x128xf32, #tpu.memory_space<vmem>>, vector<1x8x128xf32>,
    %113 = arith.mulf %83, %83 : vector<8x128xf32>
    %114 = arith.mulf %84, %84 : vector<8x128xf32>
    %115 = arith.addf %113, %114 : vector<8x128xf32>
    %116 = arith.mulf %85, %85 : vector<8x128xf32>
    %117 = arith.addf %115, %116 : vector<8x128xf32>
    %c3_34 = arith.constant 3 : index
    %c0_35 = arith.constant 0 : index
    %c0_36 = arith.constant 0 : index
    %118 = vector.load %arg2[%c3_34, %c0_35, %c0_36] : memref<14x8x128xf32, #tpu.memory_space<vmem>>, vector<1x8x128xf32>
    %119 = vector.shape_cast %118 : vector<1x8x128xf32> to vector<8x128xf32>
    %120 = vector.shape_cast %117 : vector<8x128xf32> to vector<1x8x128xf32>
    tpu.vector_store %arg2[%c3_34, %c0_35, %c0_36], %120 {strides = array<i32>} : memref<14x8x128xf32, #tpu.memory_space<vmem>>, vector<1x8x128xf32>,
    %121 = arith.mulf %83, %86 : vector<8x128xf32>
    %122 = arith.mulf %84, %87 : vector<8x128xf32>
    %123 = arith.addf %121, %122 : vector<8x128xf32>
    %124 = arith.mulf %85, %88 : vector<8x128xf32>
    %125 = arith.addf %123, %124 : vector<8x128xf32>
    %c4_37 = arith.constant 4 : index
    %c0_38 = arith.constant 0 : index
    %c0_39 = arith.constant 0 : index
    %126 = vector.load %arg2[%c4_37, %c0_38, %c0_39] : memref<14x8x128xf32, #tpu.memory_space<vmem>>, vector<1x8x128xf32>
    %127 = vector.shape_cast %126 : vector<1x8x128xf32> to vector<8x128xf32>
    %128 = vector.shape_cast %125 : vector<8x128xf32> to vector<1x8x128xf32>
    tpu.vector_store %arg2[%c4_37, %c0_38, %c0_39], %128 {strides = array<i32>} : memref<14x8x128xf32, #tpu.memory_space<vmem>>, vector<1x8x128xf32>,
    %129 = arith.mulf %86, %86 : vector<8x128xf32>
    %130 = arith.mulf %87, %87 : vector<8x128xf32>
    %131 = arith.addf %129, %130 : vector<8x128xf32>
    %132 = arith.mulf %88, %88 : vector<8x128xf32>
    %133 = arith.addf %131, %132 : vector<8x128xf32>
    %c5_40 = arith.constant 5 : index
    %c0_41 = arith.constant 0 : index
    %c0_42 = arith.constant 0 : index
    %134 = vector.load %arg2[%c5_40, %c0_41, %c0_42] : memref<14x8x128xf32, #tpu.memory_space<vmem>>, vector<1x8x128xf32>
    %135 = vector.shape_cast %134 : vector<1x8x128xf32> to vector<8x128xf32>
    %136 = vector.shape_cast %133 : vector<8x128xf32> to vector<1x8x128xf32>
    tpu.vector_store %arg2[%c5_40, %c0_41, %c0_42], %136 {strides = array<i32>} : memref<14x8x128xf32, #tpu.memory_space<vmem>>, vector<1x8x128xf32>,
    %c6_43 = arith.constant 6 : index
    %c0_44 = arith.constant 0 : index
    %c0_45 = arith.constant 0 : index
    %137 = vector.load %arg2[%c6_43, %c0_44, %c0_45] : memref<14x8x128xf32, #tpu.memory_space<vmem>>, vector<1x8x128xf32>
    %138 = vector.shape_cast %137 : vector<1x8x128xf32> to vector<8x128xf32>
    %139 = vector.shape_cast %2 : vector<8x128xf32> to vector<1x8x128xf32>
    tpu.vector_store %arg2[%c6_43, %c0_44, %c0_45], %139 {strides = array<i32>} : memref<14x8x128xf32, #tpu.memory_space<vmem>>, vector<1x8x128xf32>,
    %c7 = arith.constant 7 : index
    %c0_46 = arith.constant 0 : index
    %c0_47 = arith.constant 0 : index
    %140 = vector.load %arg2[%c7, %c0_46, %c0_47] : memref<14x8x128xf32, #tpu.memory_space<vmem>>, vector<1x8x128xf32>
    %141 = vector.shape_cast %140 : vector<1x8x128xf32> to vector<8x128xf32>
    %142 = vector.shape_cast %5 : vector<8x128xf32> to vector<1x8x128xf32>
    tpu.vector_store %arg2[%c7, %c0_46, %c0_47], %142 {strides = array<i32>} : memref<14x8x128xf32, #tpu.memory_space<vmem>>, vector<1x8x128xf32>,
    %c8 = arith.constant 8 : index
    %c0_48 = arith.constant 0 : index
    %c0_49 = arith.constant 0 : index
    %143 = vector.load %arg2[%c8, %c0_48, %c0_49] : memref<14x8x128xf32, #tpu.memory_space<vmem>>, vector<1x8x128xf32>
    %144 = vector.shape_cast %143 : vector<1x8x128xf32> to vector<8x128xf32>
    %145 = vector.shape_cast %8 : vector<8x128xf32> to vector<1x8x128xf32>
    tpu.vector_store %arg2[%c8, %c0_48, %c0_49], %145 {strides = array<i32>} : memref<14x8x128xf32, #tpu.memory_space<vmem>>, vector<1x8x128xf32>,
    %cst_50 = arith.constant 9.99999995E+11 : f32
    %146 = vector.broadcast %cst_50 : f32 to vector<8x128xf32>
    %147 = arith.minimumf %24, %146 : vector<8x128xf32>
    %148 = arith.mulf %10, %147 : vector<8x128xf32>
    %c9 = arith.constant 9 : index
    %c0_51 = arith.constant 0 : index
    %c0_52 = arith.constant 0 : index
    %149 = vector.load %arg2[%c9, %c0_51, %c0_52] : memref<14x8x128xf32, #tpu.memory_space<vmem>>, vector<1x8x128xf32>
    %150 = vector.shape_cast %149 : vector<1x8x128xf32> to vector<8x128xf32>
    %151 = vector.shape_cast %148 : vector<8x128xf32> to vector<1x8x128xf32>
    tpu.vector_store %arg2[%c9, %c0_51, %c0_52], %151 {strides = array<i32>} : memref<14x8x128xf32, #tpu.memory_space<vmem>>, vector<1x8x128xf32>,
    %152 = arith.mulf %12, %147 : vector<8x128xf32>
    %c10 = arith.constant 10 : index
    %c0_53 = arith.constant 0 : index
    %c0_54 = arith.constant 0 : index
    %153 = vector.load %arg2[%c10, %c0_53, %c0_54] : memref<14x8x128xf32, #tpu.memory_space<vmem>>, vector<1x8x128xf32>
    %154 = vector.shape_cast %153 : vector<1x8x128xf32> to vector<8x128xf32>
    %155 = vector.shape_cast %152 : vector<8x128xf32> to vector<1x8x128xf32>
    tpu.vector_store %arg2[%c10, %c0_53, %c0_54], %155 {strides = array<i32>} : memref<14x8x128xf32, #tpu.memory_space<vmem>>, vector<1x8x128xf32>,
    %156 = arith.mulf %14, %147 : vector<8x128xf32>
    %c11 = arith.constant 11 : index
    %c0_55 = arith.constant 0 : index
    %c0_56 = arith.constant 0 : index
    %157 = vector.load %arg2[%c11, %c0_55, %c0_56] : memref<14x8x128xf32, #tpu.memory_space<vmem>>, vector<1x8x128xf32>
    %158 = vector.shape_cast %157 : vector<1x8x128xf32> to vector<8x128xf32>
    %159 = vector.shape_cast %156 : vector<8x128xf32> to vector<1x8x128xf32>
    tpu.vector_store %arg2[%c11, %c0_55, %c0_56], %159 {strides = array<i32>} : memref<14x8x128xf32, #tpu.memory_space<vmem>>, vector<1x8x128xf32>,
    %160 = arith.mulf %16, %147 : vector<8x128xf32>
    %c12 = arith.constant 12 : index
    %c0_57 = arith.constant 0 : index
    %c0_58 = arith.constant 0 : index
    %161 = vector.load %arg2[%c12, %c0_57, %c0_58] : memref<14x8x128xf32, #tpu.memory_space<vmem>>, vector<1x8x128xf32>
    %162 = vector.shape_cast %161 : vector<1x8x128xf32> to vector<8x128xf32>
    %163 = vector.shape_cast %160 : vector<8x128xf32> to vector<1x8x128xf32>
    tpu.vector_store %arg2[%c12, %c0_57, %c0_58], %163 {strides = array<i32>} : memref<14x8x128xf32, #tpu.memory_space<vmem>>, vector<1x8x128xf32>,
    %c7_59 = arith.constant 7 : index
    %c0_60 = arith.constant 0 : index
    %c0_61 = arith.constant 0 : index
    %164 = vector.load %arg1[%c7_59, %c0_60, %c0_61] : memref<8x8x128xf32, #tpu.memory_space<vmem>>, vector<1x8x128xf32>
    %165 = vector.shape_cast %164 : vector<1x8x128xf32> to vector<8x128xf32>
    %cst_62 = arith.constant 0.000000e+00 : f32
    %166 = vector.broadcast %cst_62 : f32 to vector<8x128xf32>
    %167 = arith.subf %166, %165 : vector<8x128xf32>
    %168 = math.exp %167 : vector<8x128xf32>
    %cst_63 = arith.constant 1.000000e+00 : f32
    %169 = vector.broadcast %cst_63 : f32 to vector<8x128xf32>
    %170 = arith.addf %169, %168 : vector<8x128xf32>
    %171 = tpu.reciprocal %170 : vector<8x128xf32> -> vector<8x128xf32>
    %c13 = arith.constant 13 : index
    %c0_64 = arith.constant 0 : index
    %c0_65 = arith.constant 0 : index
    %172 = vector.load %arg2[%c13, %c0_64, %c0_65] : memref<14x8x128xf32, #tpu.memory_space<vmem>>, vector<1x8x128xf32>
    %173 = vector.shape_cast %172 : vector<1x8x128xf32> to vector<8x128xf32>
    %174 = vector.shape_cast %171 : vector<8x128xf32> to vector<1x8x128xf32>
    tpu.vector_store %arg2[%c13, %c0_64, %c0_65], %174 {strides = array<i32>} : memref<14x8x128xf32, #tpu.memory_space<vmem>>, vector<1x8x128xf32>,
    return
  }
  func.func @transform_0(%arg0: i32) -> (i32, i32, i32) {
    %c0_i32 = arith.constant 0 : i32
    %c0_i32_0 = arith.constant 0 : i32
    %c0_i32_1 = arith.constant 0 : i32
    return %c0_i32, %arg0, %c0_i32_0 : i32, i32, i32
  }
  func.func @transform_1(%arg0: i32) -> (i32, i32, i32) {
    %c0_i32 = arith.constant 0 : i32
    %c0_i32_0 = arith.constant 0 : i32
    %c0_i32_1 = arith.constant 0 : i32
    return %c0_i32, %arg0, %c0_i32_0 : i32, i32, i32
  }
}

</mosaic_0001>

<llo_original>
// kernel: tpu_custom_call.1
$region0: #{tpu_custom_call.1}
  #allocation0 [shape = 'u32[]', space=smem, size = 0x4, offset = 0x4, fixed_abs, tag = 'smem constant byte address 0x4 - core index']
  #allocation1 [shape = 'u32[144,128]{1,0:T(1,128)}', space=vmem, size = 0x12000, scoped, tag = 'internal scratch']
  %s0 = inlined_call_operand.hbm [shape: f32[8,8,128], index: 0, kind: input, shape index: {}]
  %s1 = inlined_call_operand.hbm [shape: f32[14,8,128], index: 1, kind: output, shape index: {}]
  %s2 = sld [smem:[#allocation0]]
  $region18: #{tpu_custom_call.1} parent=0
    _
  %s4 = ssub.s32 1, %s2
  %s5 = scalar_select 0, %s4, %s2
  $region1: #{tpu_custom_call.1} parent=0
    #allocation2 [shape = 'u8[32768]{0}', space=vmem, size = 0x8000, scoped, tag = 'input window, operand 0, single buffered']
    #allocation3 [shape = 's32[1]{0}', space=sflag, size = 0x4, scoped, tag = 'scoped memory for tpu_custom_call.1']
    #allocation4 [shape = 's32[1]{0}', space=sflag, size = 0x4, scoped, tag = 'scoped memory for tpu_custom_call.1']
    #allocation5 [shape = 'u8[57344]{0}', space=vmem, size = 0xe000, scoped, tag = 'output window, operand 0, single buffered']
    %6 = vsyncpa [#allocation3], 0
    %7 = vsyncpa [#allocation4], 0
    // Predicated region
    $region2: #{tpu_custom_call.1} parent=1 // pred_check
      _
    $region3: #{tpu_custom_call.1} parent=1 // pred_check_branch
      %9 = sbr.rel (0) target = $region5
    $region4: #{tpu_custom_call.1} parent=1 // pred_region
      %s11 = ssub.s32 1024, 1024
      %12 = vsyncadd [#allocation3], %s11
      %s13 = sshll.u32 [#allocation2], 4
      %s14 = int_to_ptr.vmem [resolvable:$true] %s13
      %19 = dma.hbm_to_vmem [thread:$0]  %s0, 1024, %s14, [#allocation3], 128, 128, 8
    $region5: #{tpu_custom_call.1} parent=1 // pred_fallthru
      _
    // Predicated region
    $region6: #{tpu_custom_call.1} parent=1 // pred_check
      _
    $region7: #{tpu_custom_call.1} parent=1 // pred_check_branch
      %21 = sbr.rel (0) target = $region9
    $region8: #{tpu_custom_call.1} parent=1 // pred_region
      %22 = dma.done [#allocation3], 1024
    $region9: #{tpu_custom_call.1} parent=1 // pred_fallthru
      _
    %v23 = vld [vmem:[#allocation2] sm:$0xff]
    %v24 = vmul.f32 %v23, 1.442695
    %v25 = vpow.pop %v24
    %s26 = scalar_lea.vmem [#allocation2], 8
    %v27 = vld [vmem:[%s26] sm:$0xff]
    %v28 = vmul.f32 %v27, 1.442695
    %v29 = vpow.pop %v28
    %s30 = scalar_lea.vmem [#allocation2], 16
    %v31 = vld [vmem:[%s30] sm:$0xff]
    %v32 = vmul.f32 %v31, 1.442695
    %v33 = vpow.pop %v32
    %s34 = scalar_lea.vmem [#allocation2], 24
    %v35 = vld [vmem:[%s34] sm:$0xff]
    %s36 = scalar_lea.vmem [#allocation2], 32
    %v37 = vld [vmem:[%s36] sm:$0xff]
    %s38 = scalar_lea.vmem [#allocation2], 40
    %v39 = vld [vmem:[%s38] sm:$0xff]
    %s40 = scalar_lea.vmem [#allocation2], 48
    %v41 = vld [vmem:[%s40] sm:$0xff]
    %v42 = vmul.f32 %v35, %v35
    %v43 = vmul.f32 %v37, %v37
    %v44 = vadd.f32 %v42, %v43
    %v45 = vmul.f32 %v39, %v39
    %v46 = vadd.f32 %v44, %v45
    %v47 = vmul.f32 %v41, %v41
    %v48 = vadd.f32 %v46, %v47
    %v49 = vrsqrt.pop %v48
    %v50 = vmul.f32 %v35, %v49
    %v51 = vmul.f32 %v37, %v49
    %v52 = vmul.f32 %v39, %v49
    %v53 = vmul.f32 %v41, %v49
    %v54 = vmul.f32 %v52, %v52
    %v55 = vmul.f32 %v53, %v53
    %v56 = vadd.f32 %v54, %v55
    %v57 = vmul.f32 %v56, 2.0
    %v58 = vsub.f32 1.0, %v57
    %v59 = vmul.f32 %v51, %v52
    %v60 = vmul.f32 %v50, %v53
    %v61 = vsub.f32 %v59, %v60
    %v62 = vmul.f32 %v61, 2.0
    %v63 = vmul.f32 %v51, %v53
    %v64 = vmul.f32 %v50, %v52
    %v65 = vadd.f32 %v63, %v64
    %v66 = vmul.f32 %v65, 2.0
    %v67 = vadd.f32 %v59, %v60
    %v68 = vmul.f32 %v67, 2.0
    %v69 = vmul.f32 %v51, %v51
    %v70 = vadd.f32 %v69, %v55
    %v71 = vmul.f32 %v70, 2.0
    %v72 = vsub.f32 1.0, %v71
    %v73 = vmul.f32 %v52, %v53
    %v74 = vmul.f32 %v50, %v51
    %v75 = vsub.f32 %v73, %v74
    %v76 = vmul.f32 %v75, 2.0
    %v77 = vsub.f32 %v63, %v64
    %v78 = vmul.f32 %v77, 2.0
    %v79 = vadd.f32 %v73, %v74
    %v80 = vmul.f32 %v79, 2.0
    %v81 = vadd.f32 %v69, %v54
    %v82 = vmul.f32 %v81, 2.0
    %v83 = vsub.f32 1.0, %v82
    %v84 = vmul.f32 %v58, %v25
    %v85 = vmul.f32 %v62, %v29
    %v86 = vmul.f32 %v66, %v33
    %v87 = vmul.f32 %v68, %v25
    %v88 = vmul.f32 %v72, %v29
    %v89 = vmul.f32 %v76, %v33
    %v90 = vmul.f32 %v78, %v25
    %v91 = vmul.f32 %v80, %v29
    %v92 = vmul.f32 %v83, %v33
    %v93 = vmul.f32 %v84, %v84
    %v94 = vmul.f32 %v85, %v85
    %v95 = vadd.f32 %v93, %v94
    %v96 = vmul.f32 %v86, %v86
    %v97 = vadd.f32 %v95, %v96
    %98 = vst [vmem:[#allocation5] sm:$0xff] %v97
    %v99 = vmul.f32 %v84, %v87
    %v100 = vmul.f32 %v85, %v88
    %v101 = vadd.f32 %v99, %v100
    %v102 = vmul.f32 %v86, %v89
    %v103 = vadd.f32 %v101, %v102
    %s104 = scalar_lea.vmem [#allocation5], 8
    %105 = vst [vmem:[%s104] sm:$0xff] %v103
    %v106 = vmul.f32 %v84, %v90
    %v107 = vmul.f32 %v85, %v91
    %v108 = vadd.f32 %v106, %v107
    %v109 = vmul.f32 %v86, %v92
    %v110 = vadd.f32 %v108, %v109
    %s111 = scalar_lea.vmem [#allocation5], 16
    %112 = vst [vmem:[%s111] sm:$0xff] %v110
    %v113 = vmul.f32 %v87, %v87
    %v114 = vmul.f32 %v88, %v88
    %v115 = vadd.f32 %v113, %v114
    %v116 = vmul.f32 %v89, %v89
    %v117 = vadd.f32 %v115, %v116
    %s118 = scalar_lea.vmem [#allocation5], 24
    %119 = vst [vmem:[%s118] sm:$0xff] %v117
    %v120 = vmul.f32 %v87, %v90
    %v121 = vmul.f32 %v88, %v91
    %v122 = vadd.f32 %v120, %v121
    %v123 = vmul.f32 %v89, %v92
    %v124 = vadd.f32 %v122, %v123
    %s125 = scalar_lea.vmem [#allocation5], 32
    %126 = vst [vmem:[%s125] sm:$0xff] %v124
    %v127 = vmul.f32 %v90, %v90
    %v128 = vmul.f32 %v91, %v91
    %v129 = vadd.f32 %v127, %v128
    %v130 = vmul.f32 %v92, %v92
    %v131 = vadd.f32 %v129, %v130
    %s132 = scalar_lea.vmem [#allocation5], 40
    %133 = vst [vmem:[%s132] sm:$0xff] %v131
    %s134 = scalar_lea.vmem [#allocation5], 48
    %135 = vst [vmem:[%s134] sm:$0xff] %v25
    %s136 = scalar_lea.vmem [#allocation5], 56
    %137 = vst [vmem:[%s136] sm:$0xff] %v29
    %s138 = scalar_lea.vmem [#allocation5], 64
    %139 = vst [vmem:[%s138] sm:$0xff] %v33
    %v140 = vmin.f32 %v49, 1e+12
    %v141 = vmul.f32 %v35, %v140
    %s142 = scalar_lea.vmem [#allocation5], 72
    %143 = vst [vmem:[%s142] sm:$0xff] %v141
    %v144 = vmul.f32 %v37, %v140
    %s145 = scalar_lea.vmem [#allocation5], 80
    %146 = vst [vmem:[%s145] sm:$0xff] %v144
    %v147 = vmul.f32 %v39, %v140
    %s148 = scalar_lea.vmem [#allocation5], 88
    %149 = vst [vmem:[%s148] sm:$0xff] %v147
    %v150 = vmul.f32 %v41, %v140
    %s151 = scalar_lea.vmem [#allocation5], 96
    %152 = vst [vmem:[%s151] sm:$0xff] %v150
    %s153 = scalar_lea.vmem [#allocation2], 56
    %v154 = vld [vmem:[%s153] sm:$0xff]
    %v155 = vsub.f32 0.0, %v154
    %v156 = vmul.f32 %v155, 1.442695
    %v157 = vpow.pop %v156
    %v158 = vadd.f32 %v157, 1.0
    %v159 = vrcp.pop %v158
    %s160 = scalar_lea.vmem [#allocation5], 104
    %161 = vst [vmem:[%s160] sm:$0xff] %v159
    // Predicated region
    $region10: #{tpu_custom_call.1} parent=1 // pred_check
      _
    $region11: #{tpu_custom_call.1} parent=1 // pred_check_branch
      %163 = sbr.rel (0) target = $region13
    $region12: #{tpu_custom_call.1} parent=1 // pred_region
      %s165 = ssub.s32 1792, 1792
      %166 = vsyncadd [#allocation4], %s165
      %s167 = sshll.u32 [#allocation5], 4
      %s168 = int_to_ptr.vmem [resolvable:$true] %s167
      %173 = dma.vmem_to_hbm [thread:$0]  %s168, 1792, %s1, [#allocation4], 128, 128, 8
    $region13: #{tpu_custom_call.1} parent=1 // pred_fallthru
      _
    // Predicated region
    $region14: #{tpu_custom_call.1} parent=1 // pred_check
      _
    $region15: #{tpu_custom_call.1} parent=1 // pred_check_branch
      %175 = sbr.rel (0) target = $region17
    $region16: #{tpu_custom_call.1} parent=1 // pred_region
      %176 = dma.done [#allocation4], 1792
    $region17: #{tpu_custom_call.1} parent=1 // pred_fallthru
      _
    %177 = vsyncpa [#allocation3], 1
    %178 = vsyncpa [#allocation4], 1

</llo_original>
